<compile_context>
chip_gen: v5e
topology: v5e:2x2
jax: 0.10.0
libtpu: 0.0.40
codegen_flags: <defaults>
</compile_context>

<pallas_src>
import jax
import jax.numpy as jnp
from jax.experimental import pallas as pl
from jax.experimental.pallas import tpu as pltpu


# ----------------------------------------------------------------------------
# Helpers
# ----------------------------------------------------------------------------
def _round_up(n, m):
    return ((n + m - 1) // m) * m


def _pad2d(p):
    """Zero-pad a 2-D param: last dim to x128; first dim to x128 unless it is 1.

    IMPORTANT: padding MUST be zeros (also for gamma/beta/bias).  The masked-LayerNorm
    mean uses a plain sum over all lanes, which is only exact because padded lanes of
    h stay exactly zero through every layer (zero gamma/beta/bias/weights in the pad
    lanes guarantee that).  Do not change this to ones-padding.
    """
    r, c = p.shape
    rp = r if r == 1 else _round_up(r, 128)
    cp = _round_up(c, 128)
    if (rp, cp) == (r, c):
        return p
    return jnp.pad(p, ((0, rp - r), (0, cp - c)))


def _vmem_capacity_bytes():
    """Physical VMEM of the current chip; conservative fallback (v7x per-TC)."""
    try:
        info = pltpu.get_tpu_info()
        cap = getattr(info, "vmem_capacity_bytes", None)
        if cap:
            return int(cap)
    except Exception:
        pass
    return 64 << 20


def _choose_batch_tiling(B, block_batch, max_d_pad):
    """Pick (tile, B_pad, n_steps).  tile is a multiple of 8; n_steps >= 2 when B > 8
    so v7x's two TensorCores both get work; padding waste is at most a few rows."""
    if block_batch is None:
        # Overhead-dominated tiny-feature models benefit from bigger M tiles;
        # large hidden dims need smaller tiles to respect the v7x 64 MiB budget.
        if max_d_pad <= 256:
            block_batch = 512
        elif max_d_pad <= 1024:
            block_batch = 256
        else:
            block_batch = 128
    if B <= 8:
        tile = _round_up(max(B, 1), 8)
        return tile, tile, 1
    n = max(pl.cdiv(B, block_batch), 2)
    tile = max(_round_up(pl.cdiv(B, n), 8), 8)
    n = pl.cdiv(B, tile)                      # shrink step count if tile grew
    return tile, n * tile, n


def _vmem_usage_bytes(padded_params, tile, d_in_pad, d_out_pad, max_d_pad):
    param_bytes = sum(int(p.size) * p.dtype.itemsize for p in padded_params)
    io_bytes = 2 * tile * d_in_pad * 4 + 2 * tile * d_out_pad * 4   # double-buffered tiles
    inter_bytes = 4 * tile * max_d_pad * 4                          # fused f32 temporaries
    return param_bytes, param_bytes + io_bytes + inter_bytes


# ----------------------------------------------------------------------------
# Kernel
# ----------------------------------------------------------------------------
def _make_ff_kernel(num_layers, activation, layer_norm, residual_connection,
                    ln_valid_dims):
    """Fused kernel: all hidden layers + output projection, weights VMEM-resident."""

    def kernel(x_ref, *refs):
        out_ref = refs[-1]
        params = refs[:-1]

        # Memoized lane masks: built once per unique (d_pad, d_valid) instead of once
        # per layer of the unrolled loop (JAX does not CSE broadcast_in_dim).
        masks = {}

        def lane_mask(d_pad, d_valid):
            key = (d_pad, d_valid)
            if key not in masks:
                lane = jax.lax.broadcasted_iota(jnp.int32, (1, d_pad), 1)
                masks[key] = lane < d_valid
            return masks[key]

        h = x_ref[...].astype(jnp.float32)          # (bb, d_in_pad), pad lanes are 0
        idx = 0
        for l in range(num_layers):
            if layer_norm:
                gamma = params[idx][...].astype(jnp.float32)     # (1, d_pad)
                beta = params[idx + 1][...].astype(jnp.float32)  # (1, d_pad)
                idx += 2
                d_valid = ln_valid_dims[l]
                d_pad = h.shape[-1]
                if d_pad == d_valid:
                    mean = jnp.mean(h, axis=-1, keepdims=True)
                    centered = h - mean
                    var = jnp.mean(centered * centered, axis=-1, keepdims=True)
                else:
                    # padded lanes of h are zero -> plain sum is exact for the mean;
                    # mask the variance so (0 - mean)^2 in pad lanes doesn't leak in.
                    mask = lane_mask(d_pad, d_valid)
                    mean = jnp.sum(h, axis=-1, keepdims=True) * (1.0 / d_valid)
                    centered = h - mean
                    var = jnp.sum(jnp.where(mask, centered * centered, 0.0),
                                  axis=-1, keepdims=True) * (1.0 / d_valid)
                hn = centered * jax.lax.rsqrt(var + 1e-5) * gamma + beta
            else:
                hn = h

            w = params[idx][...]                    # (d_in_pad, d_hid_pad), maybe bf16
            b = params[idx + 1][...].astype(jnp.float32)   # (1, d_hid_pad)
            idx += 2
            y = jnp.dot(hn.astype(w.dtype), w,
                        preferred_element_type=jnp.float32) + b
            if activation == "tanh":
                # EUP-bound for narrow hidden dims; relu is VPU-only and ~2x faster there.
                y = jnp.tanh(y)
            elif activation == "relu":
                y = jnp.maximum(y, 0.0)
            else:
                raise ValueError(activation)
            # nn.Dropout(0) -> identity
            h = h + y if residual_connection else y

        w_out = params[idx][...]                    # (d_last_pad, d_out_pad)
        b_out = params[idx + 1][...].astype(jnp.float32)
        out_ref[...] = jnp.dot(h.astype(w_out.dtype), w_out,
                               preferred_element_type=jnp.float32) + b_out

    return kernel


# ----------------------------------------------------------------------------
# Wrapper
# ----------------------------------------------------------------------------
def ff_forward_pallas(x, flat_params, *, num_layers, dim_output, activation="tanh",
                      layer_norm=False, residual_connection=False,
                      block_batch=None, matmul_dtype=jnp.bfloat16):
    """x: (B, dim_input) f32.  flat_params: list of 2-D f32 arrays in kernel order
    ([gamma, beta]?, W^T, b) per layer, then (W_out^T, b_out)."""
    B, dim_input = x.shape

    # Mirror the module's constraint.
    if residual_connection and num_layers >= 1:
        first_w = flat_params[2 if layer_norm else 0]
        assert first_w.shape[1] == dim_input, \
            "residual_connection requires dim_hidden == dim_input"

    # ---- pad params to lane-dense shapes, classify, collect static dims -------
    padded_params = []
    ln_valid_dims = []
    layer_dims = []                      # (d_in, d_out) per matmul (incl. output proj)
    idx = 0
    d_cur = dim_input
    for _ in range(num_layers):
        if layer_norm:
            g, be = flat_params[idx], flat_params[idx + 1]
            idx += 2
            ln_valid_dims.append(d_cur)
            padded_params += [_pad2d(g), _pad2d(be)]
        w, b = flat_params[idx], flat_params[idx + 1]
        idx += 2
        layer_dims.append((d_cur, w.shape[1]))
        padded_params += [_pad2d(w).astype(matmul_dtype), _pad2d(b)]
        d_cur = w.shape[1]
    w_out, b_out = flat_params[idx], flat_params[idx + 1]
    assert w_out.shape[1] == dim_output
    layer_dims.append((d_cur, dim_output))
    padded_params += [_pad2d(w_out).astype(matmul_dtype), _pad2d(b_out)]

    d_in_pad = _round_up(dim_input, 128)
    d_out_pad = _round_up(dim_output, 128)
    max_d_pad = max(_round_up(d, 128)
                    for dims in layer_dims for d in dims)

    # ---- batch tiling (>=2 grid steps for v7x's 2 TCs; minimal tail padding) --
    tile, B_pad, n_steps = _choose_batch_tiling(B, block_batch, max_d_pad)

    # ---- VMEM budget / residency check ----------------------------------------
    vmem_cap = _vmem_capacity_bytes()
    budget = int(0.85 * vmem_cap)
    param_bytes, usage = _vmem_usage_bytes(padded_params, tile,
                                           d_in_pad, d_out_pad, max_d_pad)
    if usage > budget and tile > 128:
        # Shrink the batch tile before giving up on full weight residency.
        tile, B_pad, n_steps = _choose_batch_tiling(B, 128, max_d_pad)
        param_bytes, usage = _vmem_usage_bytes(padded_params, tile,
                                               d_in_pad, d_out_pad, max_d_pad)
    if param_bytes > budget:
        # TODO(synk): stream weights per layer (pipelined BlockSpec / emit_pipeline)
        # instead of full VMEM residency when parameters exceed physical VMEM.
        raise ValueError(
            f"FF parameters ({param_bytes/2**20:.1f} MiB padded) exceed the VMEM "
            f"residency budget ({budget/2**20:.1f} MiB); use bf16 weights or "
            f"weight streaming.")
    vmem_limit = min(max(int(usage * 1.2), 16 << 20), budget)

    # ---- pad x: features to x128, batch to n_steps * tile ---------------------
    x_pad = x
    if (B_pad, d_in_pad) != (B, dim_input):
        x_pad = jnp.pad(x, ((0, B_pad - B), (0, d_in_pad - dim_input)))

    kernel = _make_ff_kernel(num_layers, activation, layer_norm,
                             residual_connection, tuple(ln_valid_dims))

    # x is batch-tiled; params are whole-array VMEM resident (no pipelining buffers).
    in_specs = [pl.BlockSpec((tile, d_in_pad), lambda i: (i, 0))]
    in_specs += [pl.BlockSpec(memory_space=pltpu.MemorySpace.VMEM)
                 for _ in padded_params]
    out_specs = pl.BlockSpec((tile, d_out_pad), lambda i: (i, 0))

    # Advisory cost estimate so XLA can schedule/overlap around the custom call.
    flops = sum(2 * B_pad * _round_up(di, 128) * _round_up(do, 128)
                for (di, do) in layer_dims)
    transcendentals = (sum(B_pad * _round_up(do, 128)
                           for (_, do) in layer_dims[:num_layers])
                       if activation == "tanh" else 0)
    bytes_accessed = (x_pad.size * x_pad.dtype.itemsize
                      + sum(int(p.size) * p.dtype.itemsize for p in padded_params)
                      + B_pad * d_out_pad * 4)

    out = pl.pallas_call(
        kernel,
        out_shape=jax.ShapeDtypeStruct((B_pad, d_out_pad), jnp.float32),
        grid=(n_steps,),
        in_specs=in_specs,
        out_specs=out_specs,
        compiler_params=pltpu.CompilerParams(
            dimension_semantics=("parallel",),
            vmem_limit_bytes=vmem_limit),
        cost_estimate=pl.CostEstimate(flops=flops,
                                      transcendentals=transcendentals,
                                      bytes_accessed=bytes_accessed),
    )(x_pad, *padded_params)

    return out[:B, :dim_output]


# ----------------------------------------------------------------------------
# Deterministic parameter construction (PyTorch Linear/LayerNorm shapes)
# ----------------------------------------------------------------------------
def init_ff_params(key, dim_input, dim_hidden, dim_output, num_layers, layer_norm):
    """Returns flat list of params in the exact order the kernel consumes them."""
    flat = []
    d_in = dim_input
    for _ in range(num_layers):
        if layer_norm:
            flat.append(jnp.ones((1, d_in), jnp.float32))    # gamma
            flat.append(jnp.zeros((1, d_in), jnp.float32))   # beta
        key, kw, kb = jax.random.split(key, 3)
        bound = 1.0 / (d_in ** 0.5)
        w = jax.random.uniform(kw, (dim_hidden, d_in), jnp.float32, -bound, bound)
        b = jax.random.uniform(kb, (dim_hidden,), jnp.float32, -bound, bound)
        flat.append(w.T)                                      # (d_in, d_hidden)
        flat.append(b.reshape(1, dim_hidden))
        d_in = dim_hidden
    d_last = dim_input if num_layers < 1 else dim_hidden
    key, kw, kb = jax.random.split(key, 3)
    bound = 1.0 / (d_last ** 0.5)
    w_out = jax.random.uniform(kw, (dim_output, d_last), jnp.float32, -bound, bound)
    b_out = jax.random.uniform(kb, (dim_output,), jnp.float32, -bound, bound)
    flat.append(w_out.T)
    flat.append(b_out.reshape(1, dim_output))
    return flat


# ----------------------------------------------------------------------------
# Pure-JAX reference (mirrors the PyTorch forward)
# ----------------------------------------------------------------------------
def ff_forward_ref(x, flat_params, *, num_layers, activation,
                   layer_norm, residual_connection):
    h = x
    idx = 0
    for _ in range(num_layers):
        if layer_norm:
            gamma, beta = flat_params[idx], flat_params[idx + 1]
            idx += 2
            mean = jnp.mean(h, axis=-1, keepdims=True)
            var = jnp.mean((h - mean) ** 2, axis=-1, keepdims=True)
            hn = (h - mean) / jnp.sqrt(var + 1e-5) * gamma + beta
        else:
            hn = h
        w, b = flat_params[idx], flat_params[idx + 1]
        idx += 2
        y = hn @ w + b
        y = jnp.tanh(y) if activation == "tanh" else jnp.maximum(y, 0.0)
        h = h + y if residual_connection else y
    w_out, b_out = flat_params[idx], flat_params[idx + 1]
    return h @ w_out + b_out


# ----------------------------------------------------------------------------
if __name__ == "__main__":
    key = jax.random.PRNGKey(0)

    B, dim_input, dim_hidden, dim_output, num_layers = 16, 32, 32, 8, 3

    key, kx = jax.random.split(key)
    x = jax.random.normal(kx, (B, dim_input), jnp.float32)

    configs = [
        dict(activation="tanh", layer_norm=False, residual_connection=False),  # defaults
        dict(activation="relu", layer_norm=True, residual_connection=True),    # all on
    ]

    # f32-matmul path: tight check against the pure-JAX reference.
    for cfg in configs:
        key, kp = jax.random.split(key)
        params = init_ff_params(kp, dim_input, dim_hidden, dim_output,
                                num_layers, cfg["layer_norm"])
        out = ff_forward_pallas(x, params, num_layers=num_layers,
                                dim_output=dim_output,
                                matmul_dtype=jnp.float32, **cfg)
        out = jax.block_until_ready(out)
        ref = ff_forward_ref(x, params, num_layers=num_layers, **cfg)
        assert out.shape == (B, dim_output)
        assert jnp.allclose(out, ref, atol=1e-5, rtol=1e-5), (
            f"mismatch for config {cfg}: max err "
            f"{float(jnp.max(jnp.abs(out - ref)))}")

    # Default bf16-matmul fast path (bf16-native MXU on v5e/v6e/v7x): looser tolerance
    # vs the f32 reference (weights AND the normalized activations go through bf16).
    key, kp = jax.random.split(key)
    cfg = dict(activation="tanh", layer_norm=True, residual_connection=False)
    params = init_ff_params(kp, dim_input, dim_hidden, dim_output,
                            num_layers, cfg["layer_norm"])
    out = jax.block_until_ready(
        ff_forward_pallas(x, params, num_layers=num_layers, dim_output=dim_output,
                          **cfg))
    ref = ff_forward_ref(x, params, num_layers=num_layers, **cfg)
    assert out.shape == (B, dim_output)
    assert jnp.allclose(out, ref, atol=5e-2, rtol=5e-2), (
        f"bf16 mismatch: max err {float(jnp.max(jnp.abs(out - ref)))}")

    # Odd batch size: exercises the minimal-tail-padding / multi-step grid path.
    key, kx2 = jax.random.split(key)
    x_odd = jax.random.normal(kx2, (257, dim_input), jnp.float32)
    out_odd = jax.block_until_ready(
        ff_forward_pallas(x_odd, params, num_layers=num_layers,
                          dim_output=dim_output, matmul_dtype=jnp.float32, **cfg))
    ref_odd = ff_forward_ref(x_odd, params, num_layers=num_layers, **cfg)
    assert out_odd.shape == (257, dim_output)
    assert jnp.allclose(out_odd, ref_odd, atol=1e-5, rtol=1e-5), (
        f"odd-batch mismatch: max err {float(jnp.max(jnp.abs(out_odd - ref_odd)))}")

    print("KERNEL_OK")
</pallas_src>

<mosaic_0001>
module attributes {stable_mosaic.version = 11 : i64} {
  func.func @kernel(%arg0: i32, %arg1: memref<8x128xf32, #tpu.memory_space<vmem>>, %arg2: memref<128x128xf32, #tpu.memory_space<vmem>>, %arg3: memref<1x128xf32, #tpu.memory_space<vmem>>, %arg4: memref<128x128xf32, #tpu.memory_space<vmem>>, %arg5: memref<1x128xf32, #tpu.memory_space<vmem>>, %arg6: memref<128x128xf32, #tpu.memory_space<vmem>>, %arg7: memref<1x128xf32, #tpu.memory_space<vmem>>, %arg8: memref<128x128xf32, #tpu.memory_space<vmem>>, %arg9: memref<1x128xf32, #tpu.memory_space<vmem>>, %arg10: memref<8x128xf32, #tpu.memory_space<vmem>>) attributes {dimension_semantics = [#tpu.dimension_semantics<parallel>], iteration_bounds = array<i64: 2>, scalar_prefetch = 0 : i64, scratch_operands = 0 : i64, tpu.core_type = #tpu.core_type<tc>, window_params = [{transform_indices = @transform_0, window_bounds = array<i64: 8, 128>}, {pipeline_mode = #tpu.pipeline_mode<synchronous>, transform_indices = @transform_1, window_bounds = array<i64: 128, 128>}, {pipeline_mode = #tpu.pipeline_mode<synchronous>, transform_indices = @transform_2, window_bounds = array<i64: 1, 128>}, {pipeline_mode = #tpu.pipeline_mode<synchronous>, transform_indices = @transform_3, window_bounds = array<i64: 128, 128>}, {pipeline_mode = #tpu.pipeline_mode<synchronous>, transform_indices = @transform_4, window_bounds = array<i64: 1, 128>}, {pipeline_mode = #tpu.pipeline_mode<synchronous>, transform_indices = @transform_5, window_bounds = array<i64: 128, 128>}, {pipeline_mode = #tpu.pipeline_mode<synchronous>, transform_indices = @transform_6, window_bounds = array<i64: 1, 128>}, {pipeline_mode = #tpu.pipeline_mode<synchronous>, transform_indices = @transform_7, window_bounds = array<i64: 128, 128>}, {pipeline_mode = #tpu.pipeline_mode<synchronous>, transform_indices = @transform_8, window_bounds = array<i64: 1, 128>}, {transform_indices = @transform_9, window_bounds = array<i64: 8, 128>}]} {
    %c0 = arith.constant 0 : index
    %c0_0 = arith.constant 0 : index
    %0 = vector.load %arg1[%c0, %c0_0] : memref<8x128xf32, #tpu.memory_space<vmem>>, vector<8x128xf32>
    %c0_1 = arith.constant 0 : index
    %c0_2 = arith.constant 0 : index
    %1 = vector.load %arg2[%c0_1, %c0_2] : memref<128x128xf32, #tpu.memory_space<vmem>>, vector<128x128xf32>
    %c0_3 = arith.constant 0 : index
    %c0_4 = arith.constant 0 : index
    %2 = vector.load %arg3[%c0_3, %c0_4] : memref<1x128xf32, #tpu.memory_space<vmem>>, vector<1x128xf32>
    %cst = arith.constant dense<0.000000e+00> : vector<8x128xf32>
    %3 = tpu.matmul %0, %1, %cst {dimension_numbers = #tpu.dot_dimension_numbers<[1], [0], [0], [1], [0, 0, 1, 1], [], []>} : vector<8x128xf32>, vector<128x128xf32>, vector<8x128xf32> -> vector<8x128xf32>
    %4 = vector.broadcast %2 : vector<1x128xf32> to vector<8x128xf32>
    %5 = arith.addf %3, %4 : vector<8x128xf32>
    %6 = math.tanh %5 : vector<8x128xf32>
    %c0_5 = arith.constant 0 : index
    %c0_6 = arith.constant 0 : index
    %7 = vector.load %arg4[%c0_5, %c0_6] : memref<128x128xf32, #tpu.memory_space<vmem>>, vector<128x128xf32>
    %c0_7 = arith.constant 0 : index
    %c0_8 = arith.constant 0 : index
    %8 = vector.load %arg5[%c0_7, %c0_8] : memref<1x128xf32, #tpu.memory_space<vmem>>, vector<1x128xf32>
    %cst_9 = arith.constant dense<0.000000e+00> : vector<8x128xf32>
    %9 = tpu.matmul %6, %7, %cst_9 {dimension_numbers = #tpu.dot_dimension_numbers<[1], [0], [0], [1], [0, 0, 1, 1], [], []>} : vector<8x128xf32>, vector<128x128xf32>, vector<8x128xf32> -> vector<8x128xf32>
    %10 = vector.broadcast %8 : vector<1x128xf32> to vector<8x128xf32>
    %11 = arith.addf %9, %10 : vector<8x128xf32>
    %12 = math.tanh %11 : vector<8x128xf32>
    %c0_10 = arith.constant 0 : index
    %c0_11 = arith.constant 0 : index
    %13 = vector.load %arg6[%c0_10, %c0_11] : memref<128x128xf32, #tpu.memory_space<vmem>>, vector<128x128xf32>
    %c0_12 = arith.constant 0 : index
    %c0_13 = arith.constant 0 : index
    %14 = vector.load %arg7[%c0_12, %c0_13] : memref<1x128xf32, #tpu.memory_space<vmem>>, vector<1x128xf32>
    %cst_14 = arith.constant dense<0.000000e+00> : vector<8x128xf32>
    %15 = tpu.matmul %12, %13, %cst_14 {dimension_numbers = #tpu.dot_dimension_numbers<[1], [0], [0], [1], [0, 0, 1, 1], [], []>} : vector<8x128xf32>, vector<128x128xf32>, vector<8x128xf32> -> vector<8x128xf32>
    %16 = vector.broadcast %14 : vector<1x128xf32> to vector<8x128xf32>
    %17 = arith.addf %15, %16 : vector<8x128xf32>
    %18 = math.tanh %17 : vector<8x128xf32>
    %c0_15 = arith.constant 0 : index
    %c0_16 = arith.constant 0 : index
    %19 = vector.load %arg8[%c0_15, %c0_16] : memref<128x128xf32, #tpu.memory_space<vmem>>, vector<128x128xf32>
    %c0_17 = arith.constant 0 : index
    %c0_18 = arith.constant 0 : index
    %20 = vector.load %arg9[%c0_17, %c0_18] : memref<1x128xf32, #tpu.memory_space<vmem>>, vector<1x128xf32>
    %cst_19 = arith.constant dense<0.000000e+00> : vector<8x128xf32>
    %21 = tpu.matmul %18, %19, %cst_19 {dimension_numbers = #tpu.dot_dimension_numbers<[1], [0], [0], [1], [0, 0, 1, 1], [], []>} : vector<8x128xf32>, vector<128x128xf32>, vector<8x128xf32> -> vector<8x128xf32>
    %22 = vector.broadcast %20 : vector<1x128xf32> to vector<8x128xf32>
    %23 = arith.addf %21, %22 : vector<8x128xf32>
    %c0_20 = arith.constant 0 : index
    %c0_21 = arith.constant 0 : index
    %24 = vector.load %arg10[%c0_20, %c0_21] : memref<8x128xf32, #tpu.memory_space<vmem>>, vector<8x128xf32>
    tpu.vector_store %arg10[%c0_20, %c0_21], %23 {strides = array<i32>} : memref<8x128xf32, #tpu.memory_space<vmem>>, vector<8x128xf32>,
    return
  }
  func.func @transform_0(%arg0: i32) -> (i32, i32) {
    %c0_i32 = arith.constant 0 : i32
    %c0_i32_0 = arith.constant 0 : i32
    return %arg0, %c0_i32 : i32, i32
  }
  func.func @transform_1(%arg0: i32) -> (i32, i32) {
    %c0_i32 = arith.constant 0 : i32
    %c0_i32_0 = arith.constant 0 : i32
    %c0_i32_1 = arith.constant 0 : i32
    return %c0_i32, %c0_i32_0 : i32, i32
  }
  func.func @transform_2(%arg0: i32) -> (i32, i32) {
    %c0_i32 = arith.constant 0 : i32
    %c0_i32_0 = arith.constant 0 : i32
    %c0_i32_1 = arith.constant 0 : i32
    return %c0_i32, %c0_i32_0 : i32, i32
  }
  func.func @transform_3(%arg0: i32) -> (i32, i32) {
    %c0_i32 = arith.constant 0 : i32
    %c0_i32_0 = arith.constant 0 : i32
    %c0_i32_1 = arith.constant 0 : i32
    return %c0_i32, %c0_i32_0 : i32, i32
  }
  func.func @transform_4(%arg0: i32) -> (i32, i32) {
    %c0_i32 = arith.constant 0 : i32
    %c0_i32_0 = arith.constant 0 : i32
    %c0_i32_1 = arith.constant 0 : i32
    return %c0_i32, %c0_i32_0 : i32, i32
  }
  func.func @transform_5(%arg0: i32) -> (i32, i32) {
    %c0_i32 = arith.constant 0 : i32
    %c0_i32_0 = arith.constant 0 : i32
    %c0_i32_1 = arith.constant 0 : i32
    return %c0_i32, %c0_i32_0 : i32, i32
  }
  func.func @transform_6(%arg0: i32) -> (i32, i32) {
    %c0_i32 = arith.constant 0 : i32
    %c0_i32_0 = arith.constant 0 : i32
    %c0_i32_1 = arith.constant 0 : i32
    return %c0_i32, %c0_i32_0 : i32, i32
  }
  func.func @transform_7(%arg0: i32) -> (i32, i32) {
    %c0_i32 = arith.constant 0 : i32
    %c0_i32_0 = arith.constant 0 : i32
    %c0_i32_1 = arith.constant 0 : i32
    return %c0_i32, %c0_i32_0 : i32, i32
  }
  func.func @transform_8(%arg0: i32) -> (i32, i32) {
    %c0_i32 = arith.constant 0 : i32
    %c0_i32_0 = arith.constant 0 : i32
    %c0_i32_1 = arith.constant 0 : i32
    return %c0_i32, %c0_i32_0 : i32, i32
  }
  func.func @transform_9(%arg0: i32) -> (i32, i32) {
    %c0_i32 = arith.constant 0 : i32
    %c0_i32_0 = arith.constant 0 : i32
    return %arg0, %c0_i32 : i32, i32
  }
}

</mosaic_0001>

<llo_original>
// kernel: tpu_custom_call.1
$region0: #{tpu_custom_call.1}
  #allocation0 [shape = 'u32[]', space=smem, size = 0x4, offset = 0x4, fixed_abs, tag = 'smem constant byte address 0x4 - core index']
  #allocation1 [shape = 'u32[72,128]{1,0:T(1,128)}', space=vmem, size = 0x9000, scoped, tag = 'internal scratch']
  %s0 = inlined_call_operand.hbm [shape: f32[16,128], index: 0, kind: input, shape index: {}]
  %s1 = inlined_call_operand.hbm [shape: f32[128,128], index: 1, kind: input, shape index: {}]
  %s2 = inlined_call_operand.vmem [shape: f32[1,128], index: 2, kind: input, shape index: {}]
  %s3 = inlined_call_operand.hbm [shape: f32[128,128], index: 3, kind: input, shape index: {}]
  %s4 = inlined_call_operand.vmem [shape: f32[1,128], index: 4, kind: input, shape index: {}]
  %s5 = inlined_call_operand.hbm [shape: f32[128,128], index: 5, kind: input, shape index: {}]
  %s6 = inlined_call_operand.vmem [shape: f32[1,128], index: 6, kind: input, shape index: {}]
  %s7 = inlined_call_operand.hbm [shape: f32[128,128], index: 7, kind: input, shape index: {}]
  %s8 = inlined_call_operand.vmem [shape: f32[1,128], index: 8, kind: input, shape index: {}]
  %s9 = inlined_call_operand.hbm [shape: f32[16,128], index: 9, kind: output, shape index: {}]
  %s10 = sld [smem:[#allocation0]]
  $region89: #{tpu_custom_call.1} parent=0
    _
  %s12 = ssub.s32 1, %s10
  %s13 = scalar_select 0, %s12, %s10
  $region1: #{tpu_custom_call.1} parent=0
    #allocation2 [shape = 'u8[8192]{0}', space=vmem, size = 0x2000, scoped, tag = 'input window, operand 0']
    #allocation3 [shape = 's32[2]{0}', space=sflag, size = 0x8, scoped, tag = 'scoped memory for tpu_custom_call.1']
    #allocation4 [shape = 's32[2]{0}', space=sflag, size = 0x8, scoped, tag = 'scoped memory for tpu_custom_call.1']
    #allocation5 [shape = 'u8[65536]{0}', space=vmem, size = 0x10000, scoped, tag = 'input window, operand 1, single buffered']
    #allocation6 [shape = 's32[1]{0}', space=sflag, size = 0x4, scoped, tag = 'scoped memory for tpu_custom_call.1']
    #allocation7 [shape = 'u8[65536]{0}', space=vmem, size = 0x10000, scoped, tag = 'input window, operand 3, single buffered']
    #allocation8 [shape = 'u8[65536]{0}', space=vmem, size = 0x10000, scoped, tag = 'input window, operand 5, single buffered']
    #allocation9 [shape = 's32[1]{0}', space=sflag, size = 0x4, scoped, tag = 'scoped memory for tpu_custom_call.1']
    #allocation10 [shape = 'u8[65536]{0}', space=vmem, size = 0x10000, scoped, tag = 'input window, operand 7, single buffered']
    #allocation11 [shape = 'u8[8192]{0}', space=vmem, size = 0x2000, scoped, tag = 'output window, operand 0']
    %14 = vsyncpa [#allocation3], 0
    %s15 = scalar_lea.sflag [#allocation3], 1
    %16 = vsyncpa %s15, 0
    %17 = vsyncpa [#allocation6], 0
    %18 = vsyncpa [#allocation9], 0
    %19 = vsyncpa [#allocation4], 0
    %s20 = scalar_lea.sflag [#allocation4], 1
    %21 = vsyncpa %s20, 0
    loop: start=0, step=1, limit=4
    $region2: #{tpu_custom_call.1} parent=1 // loop_pre_header
      _
    $region3: #{tpu_custom_call.1} parent=1 // loop_header
      %s23 = sphi 0, %s27
      %p24 = scmp.ge.s32.totalorder %s23, 4
      %s33 = sphi 0, %s35
      %s36 = sphi 0, %s33
      %s37 = sphi 0, %s36
      %s53 = sphi 0, %s37
      %s57 = sphi 0, %s57
      %s59 = sphi 0, %s57
      %s60 = sphi 0, %s59
      %s74 = sphi 0, %s60
      %s78 = sphi 0, %s78
      %s80 = sphi 0, %s78
      %s81 = sphi 0, %s80
      %s95 = sphi 0, %s81
      %s99 = sphi 0, %s99
      %s101 = sphi 0, %s99
      %s102 = sphi 0, %s101
      %s116 = sphi 0, %s102
      %s120 = sphi 0, %s120
      %s122 = sphi 0, %s120
      %s123 = sphi 0, %s122
      %s137 = sphi 0, %s123
      %s141 = sphi 0, %s141
      %s143 = sphi 0, %s141
      %s144 = sphi 0, %s143
      %s158 = sphi 0, %s144
      %s162 = sphi 0, %s162
      %s164 = sphi 0, %s162
      %s165 = sphi 0, %s164
      %s179 = sphi 0, %s165
      %s183 = sphi 0, %s183
      %s185 = sphi 0, %s183
      %s186 = sphi 0, %s185
      %s200 = sphi 0, %s186
      %s204 = sphi 0, %s204
      %s206 = sphi 0, %s204
      %s207 = sphi 0, %s206
      %s221 = sphi 0, %s207
      %s227 = sphi 0, %s229
      %s230 = sphi 0, %s227
      %s231 = sphi 0, %s230
      %s247 = sphi 0, %s231
    $region4: #{tpu_custom_call.1} parent=1 // loop_header_branch
      %26 = sbr.rel (%p24) target = $region8
    $region5: #{tpu_custom_call.1} parent=1 // loop_body
      %s28 = ssub.s32 %s23, 1
      %s29 = ssub.s32 %s23, 2
      %s30 = sadd.s32 %s23, 1
      %s31 = ssub.s32 %s23, %s30
      %p32 = scmp.eq.s32.totalorder %s31, 0
      %s34 = sadd.s32 %s33, 1
      %s35 = scalar_select %p32, %s33, %s34
      %p38 = pneg %p32
      %p39 = scmp.eq.s32.totalorder %s23, 1
      %p40 = por %p38, %p39
      %p41 = scmp.ne.s32.totalorder %s33, %s36
      %p42 = scmp.eq.s32.totalorder %s23, 0
      %p43 = por %p41, %p42
      %p44 = scmp.ne.s32.totalorder %s33, %s36
      %p45 = scmp.eq.s32.totalorder %s28, 1
      %p46 = por %p44, %p45
      %p47 = scmp.ne.s32.totalorder %s36, %s37
      %p48 = scmp.eq.s32.totalorder %s28, 0
      %p49 = por %p47, %p48
      %p50 = scmp.ne.s32.totalorder %s36, %s37
      %p51 = scmp.eq.s32.totalorder %s29, 1
      %p52 = por %p50, %p51
      %p54 = scmp.ne.s32.totalorder %s37, %s53
      %p55 = scmp.eq.s32.totalorder %s29, 0
      %p56 = por %p54, %p55
      %s58 = sadd.s32 %s57, 1
      %p61 = scmp.eq.s32.totalorder %s23, 1
      %p62 = scmp.ne.s32.totalorder %s57, %s59
      %p63 = scmp.eq.s32.totalorder %s23, 0
      %p64 = por %p62, %p63
      %p65 = scmp.ne.s32.totalorder %s57, %s59
      %p66 = scmp.eq.s32.totalorder %s28, 1
      %p67 = por %p65, %p66
      %p68 = scmp.ne.s32.totalorder %s59, %s60
      %p69 = scmp.eq.s32.totalorder %s28, 0
      %p70 = por %p68, %p69
      %p71 = scmp.ne.s32.totalorder %s59, %s60
      %p72 = scmp.eq.s32.totalorder %s29, 1
      %p73 = por %p71, %p72
      %p75 = scmp.ne.s32.totalorder %s60, %s74
      %p76 = scmp.eq.s32.totalorder %s29, 0
      %p77 = por %p75, %p76
      %s79 = sadd.s32 %s78, 1
      %p82 = scmp.eq.s32.totalorder %s23, 1
      %p83 = scmp.ne.s32.totalorder %s78, %s80
      %p84 = scmp.eq.s32.totalorder %s23, 0
      %p85 = por %p83, %p84
      %p86 = scmp.ne.s32.totalorder %s78, %s80
      %p87 = scmp.eq.s32.totalorder %s28, 1
      %p88 = por %p86, %p87
      %p89 = scmp.ne.s32.totalorder %s80, %s81
      %p90 = scmp.eq.s32.totalorder %s28, 0
      %p91 = por %p89, %p90
      %p92 = scmp.ne.s32.totalorder %s80, %s81
      %p93 = scmp.eq.s32.totalorder %s29, 1
      %p94 = por %p92, %p93
      %p96 = scmp.ne.s32.totalorder %s81, %s95
      %p97 = scmp.eq.s32.totalorder %s29, 0
      %p98 = por %p96, %p97
      %s100 = sadd.s32 %s99, 1
      %p103 = scmp.eq.s32.totalorder %s23, 1
      %p104 = scmp.ne.s32.totalorder %s99, %s101
      %p105 = scmp.eq.s32.totalorder %s23, 0
      %p106 = por %p104, %p105
      %p107 = scmp.ne.s32.totalorder %s99, %s101
      %p108 = scmp.eq.s32.totalorder %s28, 1
      %p109 = por %p107, %p108
      %p110 = scmp.ne.s32.totalorder %s101, %s102
      %p111 = scmp.eq.s32.totalorder %s28, 0
      %p112 = por %p110, %p111
      %p113 = scmp.ne.s32.totalorder %s101, %s102
      %p114 = scmp.eq.s32.totalorder %s29, 1
      %p115 = por %p113, %p114
      %p117 = scmp.ne.s32.totalorder %s102, %s116
      %p118 = scmp.eq.s32.totalorder %s29, 0
      %p119 = por %p117, %p118
      %s121 = sadd.s32 %s120, 1
      %p124 = scmp.eq.s32.totalorder %s23, 1
      %p125 = scmp.ne.s32.totalorder %s120, %s122
      %p126 = scmp.eq.s32.totalorder %s23, 0
      %p127 = por %p125, %p126
      %p128 = scmp.ne.s32.totalorder %s120, %s122
      %p129 = scmp.eq.s32.totalorder %s28, 1
      %p130 = por %p128, %p129
      %p131 = scmp.ne.s32.totalorder %s122, %s123
      %p132 = scmp.eq.s32.totalorder %s28, 0
      %p133 = por %p131, %p132
      %p134 = scmp.ne.s32.totalorder %s122, %s123
      %p135 = scmp.eq.s32.totalorder %s29, 1
      %p136 = por %p134, %p135
      %p138 = scmp.ne.s32.totalorder %s123, %s137
      %p139 = scmp.eq.s32.totalorder %s29, 0
      %p140 = por %p138, %p139
      %s142 = sadd.s32 %s141, 1
      %p145 = scmp.eq.s32.totalorder %s23, 1
      %p146 = scmp.ne.s32.totalorder %s141, %s143
      %p147 = scmp.eq.s32.totalorder %s23, 0
      %p148 = por %p146, %p147
      %p149 = scmp.ne.s32.totalorder %s141, %s143
      %p150 = scmp.eq.s32.totalorder %s28, 1
      %p151 = por %p149, %p150
      %p152 = scmp.ne.s32.totalorder %s143, %s144
      %p153 = scmp.eq.s32.totalorder %s28, 0
      %p154 = por %p152, %p153
      %p155 = scmp.ne.s32.totalorder %s143, %s144
      %p156 = scmp.eq.s32.totalorder %s29, 1
      %p157 = por %p155, %p156
      %p159 = scmp.ne.s32.totalorder %s144, %s158
      %p160 = scmp.eq.s32.totalorder %s29, 0
      %p161 = por %p159, %p160
      %s163 = sadd.s32 %s162, 1
      %p166 = scmp.eq.s32.totalorder %s23, 1
      %p167 = scmp.ne.s32.totalorder %s162, %s164
      %p168 = scmp.eq.s32.totalorder %s23, 0
      %p169 = por %p167, %p168
      %p170 = scmp.ne.s32.totalorder %s162, %s164
      %p171 = scmp.eq.s32.totalorder %s28, 1
      %p172 = por %p170, %p171
      %p173 = scmp.ne.s32.totalorder %s164, %s165
      %p174 = scmp.eq.s32.totalorder %s28, 0
      %p175 = por %p173, %p174
      %p176 = scmp.ne.s32.totalorder %s164, %s165
      %p177 = scmp.eq.s32.totalorder %s29, 1
      %p178 = por %p176, %p177
      %p180 = scmp.ne.s32.totalorder %s165, %s179
      %p181 = scmp.eq.s32.totalorder %s29, 0
      %p182 = por %p180, %p181
      %s184 = sadd.s32 %s183, 1
      %p187 = scmp.eq.s32.totalorder %s23, 1
      %p188 = scmp.ne.s32.totalorder %s183, %s185
      %p189 = scmp.eq.s32.totalorder %s23, 0
      %p190 = por %p188, %p189
      %p191 = scmp.ne.s32.totalorder %s183, %s185
      %p192 = scmp.eq.s32.totalorder %s28, 1
      %p193 = por %p191, %p192
      %p194 = scmp.ne.s32.totalorder %s185, %s186
      %p195 = scmp.eq.s32.totalorder %s28, 0
      %p196 = por %p194, %p195
      %p197 = scmp.ne.s32.totalorder %s185, %s186
      %p198 = scmp.eq.s32.totalorder %s29, 1
      %p199 = por %p197, %p198
      %p201 = scmp.ne.s32.totalorder %s186, %s200
      %p202 = scmp.eq.s32.totalorder %s29, 0
      %p203 = por %p201, %p202
      %s205 = sadd.s32 %s204, 1
      %p208 = scmp.eq.s32.totalorder %s23, 1
      %p209 = scmp.ne.s32.totalorder %s204, %s206
      %p210 = scmp.eq.s32.totalorder %s23, 0
      %p211 = por %p209, %p210
      %p212 = scmp.ne.s32.totalorder %s204, %s206
      %p213 = scmp.eq.s32.totalorder %s28, 1
      %p214 = por %p212, %p213
      %p215 = scmp.ne.s32.totalorder %s206, %s207
      %p216 = scmp.eq.s32.totalorder %s28, 0
      %p217 = por %p215, %p216
      %p218 = scmp.ne.s32.totalorder %s206, %s207
      %p219 = scmp.eq.s32.totalorder %s29, 1
      %p220 = por %p218, %p219
      %p222 = scmp.ne.s32.totalorder %s207, %s221
      %p223 = scmp.eq.s32.totalorder %s29, 0
      %p224 = por %p222, %p223
      %s225 = ssub.s32 %s23, %s30
      %p226 = scmp.eq.s32.totalorder %s225, 0
      %s228 = sadd.s32 %s227, 1
      %s229 = scalar_select %p226, %s227, %s228
      %p232 = pneg %p226
      %p233 = scmp.eq.s32.totalorder %s23, 1
      %p234 = por %p232, %p233
      %p235 = scmp.ne.s32.totalorder %s227, %s230
      %p236 = scmp.eq.s32.totalorder %s23, 0
      %p237 = por %p235, %p236
      %p238 = scmp.ne.s32.totalorder %s227, %s230
      %p239 = scmp.eq.s32.totalorder %s28, 1
      %p240 = por %p238, %p239
      %p241 = scmp.ne.s32.totalorder %s230, %s231
      %p242 = scmp.eq.s32.totalorder %s28, 0
      %p243 = por %p241, %p242
      %p244 = scmp.ne.s32.totalorder %s230, %s231
      %p245 = scmp.eq.s32.totalorder %s29, 1
      %p246 = por %p244, %p245
      %p248 = scmp.ne.s32.totalorder %s231, %s247
      %p249 = scmp.eq.s32.totalorder %s29, 0
      %p250 = por %p248, %p249
      %p251 = scmp.le.s32.totalorder 1, %s23
      %p252 = scmp.lt.s32.totalorder %s23, 3
      %p253 = pnand %p251, %p252
      %p254 = pneg %p253
      // Predicated region
      $region9: #{tpu_custom_call.1} parent=5 // pred_check
        _
      $region10: #{tpu_custom_call.1} parent=5 // pred_check_branch
        %256 = sbr.rel (%p253) target = $region12
      $region11: #{tpu_custom_call.1} parent=5 // pred_region
        %s257 = ssub.s32 %s23, 1
        // Predicated region
        $region13: #{tpu_custom_call.1} parent=11 // pred_check
          %p258 = pneg %p70
        $region14: #{tpu_custom_call.1} parent=11 // pred_check_branch
          %260 = sbr.rel (%p258) target = $region16
        $region15: #{tpu_custom_call.1} parent=11 // pred_region
          %262 = vsyncadd [#allocation6], 0
          %s263 = sshll.u32 %s1, 4
          %s264 = int_to_ptr.hbm [resolvable:$true] %s263
          %s265 = sshll.u32 [#allocation5], 4
          %s266 = int_to_ptr.vmem [resolvable:$true] %s265
          %271 = dma.hbm_to_vmem [thread:$0]  %s264, 2048, %s266, [#allocation6], 128, 128, 8
        $region16: #{tpu_custom_call.1} parent=11 // pred_fallthru
          _
        // Predicated region
        $region17: #{tpu_custom_call.1} parent=11 // pred_check
          %p272 = pneg %p91
        $region18: #{tpu_custom_call.1} parent=11 // pred_check_branch
          %274 = sbr.rel (%p272) target = $region20
        $region19: #{tpu_custom_call.1} parent=11 // pred_region
          _
        $region20: #{tpu_custom_call.1} parent=11 // pred_fallthru
          _
        // Predicated region
        $region21: #{tpu_custom_call.1} parent=11 // pred_check
          %p275 = pneg %p112
        $region22: #{tpu_custom_call.1} parent=11 // pred_check_branch
          %277 = sbr.rel (%p275) target = $region24
        $region23: #{tpu_custom_call.1} parent=11 // pred_region
          %279 = vsyncadd [#allocation6], 0
          %s280 = sshll.u32 %s3, 4
          %s281 = int_to_ptr.hbm [resolvable:$true] %s280
          %s282 = sshll.u32 [#allocation7], 4
          %s283 = int_to_ptr.vmem [resolvable:$true] %s282
          %288 = dma.hbm_to_vmem [thread:$0]  %s281, 2048, %s283, [#allocation6], 128, 128, 8
        $region24: #{tpu_custom_call.1} parent=11 // pred_fallthru
          _
        // Predicated region
        $region25: #{tpu_custom_call.1} parent=11 // pred_check
          %p289 = pneg %p133
        $region26: #{tpu_custom_call.1} parent=11 // pred_check_branch
          %291 = sbr.rel (%p289) target = $region28
        $region27: #{tpu_custom_call.1} parent=11 // pred_region
          _
        $region28: #{tpu_custom_call.1} parent=11 // pred_fallthru
          _
        // Predicated region
        $region29: #{tpu_custom_call.1} parent=11 // pred_check
          %p292 = pneg %p154
        $region30: #{tpu_custom_call.1} parent=11 // pred_check_branch
          %294 = sbr.rel (%p292) target = $region32
        $region31: #{tpu_custom_call.1} parent=11 // pred_region
          %296 = vsyncadd [#allocation9], 0
          %s297 = sshll.u32 %s5, 4
          %s298 = int_to_ptr.hbm [resolvable:$true] %s297
          %s299 = sshll.u32 [#allocation8], 4
          %s300 = int_to_ptr.vmem [resolvable:$true] %s299
          %305 = dma.hbm_to_vmem [thread:$0]  %s298, 2048, %s300, [#allocation9], 128, 128, 8
        $region32: #{tpu_custom_call.1} parent=11 // pred_fallthru
          _
        // Predicated region
        $region33: #{tpu_custom_call.1} parent=11 // pred_check
          %p306 = pneg %p175
        $region34: #{tpu_custom_call.1} parent=11 // pred_check_branch
          %308 = sbr.rel (%p306) target = $region36
        $region35: #{tpu_custom_call.1} parent=11 // pred_region
          _
        $region36: #{tpu_custom_call.1} parent=11 // pred_fallthru
          _
        // Predicated region
        $region37: #{tpu_custom_call.1} parent=11 // pred_check
          %p309 = pneg %p196
        $region38: #{tpu_custom_call.1} parent=11 // pred_check_branch
          %311 = sbr.rel (%p309) target = $region40
        $region39: #{tpu_custom_call.1} parent=11 // pred_region
          %313 = vsyncadd [#allocation9], 0
          %s314 = sshll.u32 %s7, 4
          %s315 = int_to_ptr.hbm [resolvable:$true] %s314
          %s316 = sshll.u32 [#allocation10], 4
          %s317 = int_to_ptr.vmem [resolvable:$true] %s316
          %322 = dma.hbm_to_vmem [thread:$0]  %s315, 2048, %s317, [#allocation9], 128, 128, 8
        $region40: #{tpu_custom_call.1} parent=11 // pred_fallthru
          _
        // Predicated region
        $region41: #{tpu_custom_call.1} parent=11 // pred_check
          %p323 = pneg %p217
        $region42: #{tpu_custom_call.1} parent=11 // pred_check_branch
          %325 = sbr.rel (%p323) target = $region44
        $region43: #{tpu_custom_call.1} parent=11 // pred_region
          _
        $region44: #{tpu_custom_call.1} parent=11 // pred_fallthru
          _
      $region12: #{tpu_custom_call.1} parent=5 // pred_fallthru
        _
      %p326 = scmp.lt.s32.totalorder %s23, 2
      // Predicated region
      $region45: #{tpu_custom_call.1} parent=5 // pred_check
        %p327 = pneg %p326
      $region46: #{tpu_custom_call.1} parent=5 // pred_check_branch
        %329 = sbr.rel (%p327) target = $region48
      $region47: #{tpu_custom_call.1} parent=5 // pred_region
        // Predicated region
        $region49: #{tpu_custom_call.1} parent=47 // pred_check
          %p330 = pneg %p43
        $region50: #{tpu_custom_call.1} parent=47 // pred_check_branch
          %332 = sbr.rel (%p330) target = $region52
        $region51: #{tpu_custom_call.1} parent=47 // pred_region
          %s333 = sand.u32 %s33, 1
          %s334 = scalar_lea.sflag [#allocation3], %s333
          %s335 = sand.u32 %s33, 1
          %s336 = smul.addr %s335, 8
          %s337 = scalar_lea.vmem [#allocation2], %s336
          %339 = vsyncadd %s334, 0
          %s340 = smul.addr %s23, 8
          %s341 = scalar_lea.hbm %s0, %s340
          %s343 = sshll.u32 %s341, 4
          %s344 = int_to_ptr.hbm [resolvable:$true] %s343
          %s345 = sshll.u32 %s337, 4
          %s346 = int_to_ptr.vmem [resolvable:$true] %s345
          %348 = dma.hbm_to_vmem [thread:$0]  %s344, 128, %s346, %s334
        $region52: #{tpu_custom_call.1} parent=47 // pred_fallthru
          _
      $region48: #{tpu_custom_call.1} parent=5 // pred_fallthru
        _
      %p349 = scmp.le.s32.totalorder 1, %s23
      %p350 = scmp.lt.s32.totalorder %s23, 3
      %p351 = pnand %p349, %p350
      %p352 = pneg %p351
      // Predicated region
      $region53: #{tpu_custom_call.1} parent=5 // pred_check
        _
      $region54: #{tpu_custom_call.1} parent=5 // pred_check_branch
        %354 = sbr.rel (%p351) target = $region56
      $region55: #{tpu_custom_call.1} parent=5 // pred_region
        %s355 = ssub.s32 %s23, 1
        %s356 = sand.u32 %s36, 1
        %s357 = scalar_lea.sflag [#allocation3], %s356
        %s358 = sand.u32 %s36, 1
        %s359 = smul.addr %s358, 8
        %s360 = scalar_lea.vmem [#allocation2], %s359
        // Predicated region
        $region57: #{tpu_custom_call.1} parent=55 // pred_check
          %p361 = pneg %p49
        $region58: #{tpu_custom_call.1} parent=55 // pred_check_branch
          %363 = sbr.rel (%p361) target = $region60
        $region59: #{tpu_custom_call.1} parent=55 // pred_region
          %365 = dma.done %s357, 128
        $region60: #{tpu_custom_call.1} parent=55 // pred_fallthru
          _
        // Predicated region
        $region61: #{tpu_custom_call.1} parent=55 // pred_check
          %p366 = pneg %p70
        $region62: #{tpu_custom_call.1} parent=55 // pred_check_branch
          %368 = sbr.rel (%p366) target = $region64
        $region63: #{tpu_custom_call.1} parent=55 // pred_region
          %370 = dma.done [#allocation6], 2048
        $region64: #{tpu_custom_call.1} parent=55 // pred_fallthru
          _
        // Predicated region
        $region65: #{tpu_custom_call.1} parent=55 // pred_check
          %p371 = pneg %p112
        $region66: #{tpu_custom_call.1} parent=55 // pred_check_branch
          %373 = sbr.rel (%p371) target = $region68
        $region67: #{tpu_custom_call.1} parent=55 // pred_region
          %375 = dma.done [#allocation6], 2048
        $region68: #{tpu_custom_call.1} parent=55 // pred_fallthru
          _
        // Predicated region
        $region69: #{tpu_custom_call.1} parent=55 // pred_check
          %p376 = pneg %p154
        $region70: #{tpu_custom_call.1} parent=55 // pred_check_branch
          %378 = sbr.rel (%p376) target = $region72
        $region71: #{tpu_custom_call.1} parent=55 // pred_region
          %380 = dma.done [#allocation9], 2048
        $region72: #{tpu_custom_call.1} parent=55 // pred_fallthru
          _
        // Predicated region
        $region73: #{tpu_custom_call.1} parent=55 // pred_check
          %p381 = pneg %p196
        $region74: #{tpu_custom_call.1} parent=55 // pred_check_branch
          %383 = sbr.rel (%p381) target = $region76
        $region75: #{tpu_custom_call.1} parent=55 // pred_region
          %385 = dma.done [#allocation9], 2048
        $region76: #{tpu_custom_call.1} parent=55 // pred_fallthru
          _
        %s386 = sand.u32 %s36, 1
        %s387 = scalar_lea.sflag [#allocation3], %s386
        %s388 = sand.u32 %s36, 1
        %s389 = smul.addr %s388, 8
        %s390 = scalar_lea.vmem [#allocation2], %s389
        %p391 = pneg %p49
        %p392 = pneg %p46
        %p393 = pneg %p70
        %p394 = pneg %p67
        %p395 = pneg %p91
        %p396 = pneg %p88
        %p397 = pneg %p112
        %p398 = pneg %p109
        %p399 = pneg %p133
        %p400 = pneg %p130
        %p401 = pneg %p154
        %p402 = pneg %p151
        %p403 = pneg %p175
        %p404 = pneg %p172
        %p405 = pneg %p196
        %p406 = pneg %p193
        %p407 = pneg %p217
        %p408 = pneg %p214
        %p409 = pneg %p243
        %p410 = pneg %p240
        %s411 = sand.u32 %s230, 1
        %s412 = scalar_lea.sflag [#allocation4], %s411
        %s413 = sand.u32 %s230, 1
        %s414 = smul.addr %s413, 8
        %s415 = scalar_lea.vmem [#allocation11], %s414
        %v416 = vld [vmem:[%s360] sm:$0xff]
        %v417 = vld [vmem:[#allocation5] sm:$0xff]
        %v418 = vld [vmem:[#allocation5 + $0x8] sm:$0xff]
        %v419 = vld [vmem:[#allocation5 + $0x10] sm:$0xff]
        %v420 = vld [vmem:[#allocation5 + $0x18] sm:$0xff]
        %v421 = vld [vmem:[#allocation5 + $0x20] sm:$0xff]
        %v422 = vld [vmem:[#allocation5 + $0x28] sm:$0xff]
        %v423 = vld [vmem:[#allocation5 + $0x30] sm:$0xff]
        %v424 = vld [vmem:[#allocation5 + $0x38] sm:$0xff]
        %v425 = vld [vmem:[#allocation5 + $0x40] sm:$0xff]
        %v426 = vld [vmem:[#allocation5 + $0x48] sm:$0xff]
        %v427 = vld [vmem:[#allocation5 + $0x50] sm:$0xff]
        %v428 = vld [vmem:[#allocation5 + $0x58] sm:$0xff]
        %v429 = vld [vmem:[#allocation5 + $0x60] sm:$0xff]
        %v430 = vld [vmem:[#allocation5 + $0x68] sm:$0xff]
        %v431 = vld [vmem:[#allocation5 + $0x70] sm:$0xff]
        %v432 = vld [vmem:[#allocation5 + $0x78] sm:$0xff]
        %v433 = vld [vmem:[%s2] sm:$0x1]
        %v435 = vperm.slane %v433, 0
        %437 = vmatpush.msra.mxu0 %v432
        %438 = vmatpush.msra.mxu0 %v431
        %439 = vmatpush.msra.mxu0 %v430
        %440 = vmatpush.msra.mxu0 %v429
        %441 = vmatpush.msra.mxu0 %v428
        %442 = vmatpush.msra.mxu0 %v427
        %443 = vmatpush.msra.mxu0 %v426
        %444 = vmatpush.msra.mxu0 %v425
        %445 = vmatpush.msra.mxu0 %v424
        %446 = vmatpush.msra.mxu0 %v423
        %447 = vmatpush.msra.mxu0 %v422
        %448 = vmatpush.msra.mxu0 %v421
        %449 = vmatpush.msra.mxu0 %v420
        %450 = vmatpush.msra.mxu0 %v419
        %451 = vmatpush.msra.mxu0 %v418
        %452 = vmatpush.msra.mxu0 %v417
        %453 = vmatmul.f32.gmra.mxu0 %v416
        %v454 = vpop.f32.mrf.mxu0
        %v455 = vadd.f32 %v435, %v454
        %456 = vdwg.mxu0
        %v457 = vtanh.pop %v455
        %v458 = vld [vmem:[#allocation7] sm:$0xff]
        %v459 = vld [vmem:[#allocation7 + $0x8] sm:$0xff]
        %v460 = vld [vmem:[#allocation7 + $0x10] sm:$0xff]
        %v461 = vld [vmem:[#allocation7 + $0x18] sm:$0xff]
        %v462 = vld [vmem:[#allocation7 + $0x20] sm:$0xff]
        %v463 = vld [vmem:[#allocation7 + $0x28] sm:$0xff]
        %v464 = vld [vmem:[#allocation7 + $0x30] sm:$0xff]
        %v465 = vld [vmem:[#allocation7 + $0x38] sm:$0xff]
        %v466 = vld [vmem:[#allocation7 + $0x40] sm:$0xff]
        %v467 = vld [vmem:[#allocation7 + $0x48] sm:$0xff]
        %v468 = vld [vmem:[#allocation7 + $0x50] sm:$0xff]
        %v469 = vld [vmem:[#allocation7 + $0x58] sm:$0xff]
        %v470 = vld [vmem:[#allocation7 + $0x60] sm:$0xff]
        %v471 = vld [vmem:[#allocation7 + $0x68] sm:$0xff]
        %v472 = vld [vmem:[#allocation7 + $0x70] sm:$0xff]
        %v473 = vld [vmem:[#allocation7 + $0x78] sm:$0xff]
        %v474 = vld [vmem:[%s4] sm:$0x1]
        %v476 = vperm.slane %v474, 0
        %478 = vmatpush.msra.mxu0 %v473
        %479 = vmatpush.msra.mxu0 %v472
        %480 = vmatpush.msra.mxu0 %v471
        %481 = vmatpush.msra.mxu0 %v470
        %482 = vmatpush.msra.mxu0 %v469
        %483 = vmatpush.msra.mxu0 %v468
        %484 = vmatpush.msra.mxu0 %v467
        %485 = vmatpush.msra.mxu0 %v466
        %486 = vmatpush.msra.mxu0 %v465
        %487 = vmatpush.msra.mxu0 %v464
        %488 = vmatpush.msra.mxu0 %v463
        %489 = vmatpush.msra.mxu0 %v462
        %490 = vmatpush.msra.mxu0 %v461
        %491 = vmatpush.msra.mxu0 %v460
        %492 = vmatpush.msra.mxu0 %v459
        %493 = vmatpush.msra.mxu0 %v458
        %494 = vmatmul.f32.gmra.mxu0 %v457
        %v495 = vpop.f32.mrf.mxu0
        %v496 = vadd.f32 %v476, %v495
        %497 = vdwg.mxu0
        %v498 = vtanh.pop %v496
        %v499 = vld [vmem:[#allocation8] sm:$0xff]
        %v500 = vld [vmem:[#allocation8 + $0x8] sm:$0xff]
        %v501 = vld [vmem:[#allocation8 + $0x10] sm:$0xff]
        %v502 = vld [vmem:[#allocation8 + $0x18] sm:$0xff]
        %v503 = vld [vmem:[#allocation8 + $0x20] sm:$0xff]
        %v504 = vld [vmem:[#allocation8 + $0x28] sm:$0xff]
        %v505 = vld [vmem:[#allocation8 + $0x30] sm:$0xff]
        %v506 = vld [vmem:[#allocation8 + $0x38] sm:$0xff]
        %v507 = vld [vmem:[#allocation8 + $0x40] sm:$0xff]
        %v508 = vld [vmem:[#allocation8 + $0x48] sm:$0xff]
        %v509 = vld [vmem:[#allocation8 + $0x50] sm:$0xff]
        %v510 = vld [vmem:[#allocation8 + $0x58] sm:$0xff]
        %v511 = vld [vmem:[#allocation8 + $0x60] sm:$0xff]
        %v512 = vld [vmem:[#allocation8 + $0x68] sm:$0xff]
        %v513 = vld [vmem:[#allocation8 + $0x70] sm:$0xff]
        %v514 = vld [vmem:[#allocation8 + $0x78] sm:$0xff]
        %v515 = vld [vmem:[%s6] sm:$0x1]
        %v517 = vperm.slane %v515, 0
        %519 = vmatpush.msra.mxu0 %v514
        %520 = vmatpush.msra.mxu0 %v513
        %521 = vmatpush.msra.mxu0 %v512
        %522 = vmatpush.msra.mxu0 %v511
        %523 = vmatpush.msra.mxu0 %v510
        %524 = vmatpush.msra.mxu0 %v509
        %525 = vmatpush.msra.mxu0 %v508
        %526 = vmatpush.msra.mxu0 %v507
        %527 = vmatpush.msra.mxu0 %v506
        %528 = vmatpush.msra.mxu0 %v505
        %529 = vmatpush.msra.mxu0 %v504
        %530 = vmatpush.msra.mxu0 %v503
        %531 = vmatpush.msra.mxu0 %v502
        %532 = vmatpush.msra.mxu0 %v501
        %533 = vmatpush.msra.mxu0 %v500
        %534 = vmatpush.msra.mxu0 %v499
        %535 = vmatmul.f32.gmra.mxu0 %v498
        %v536 = vpop.f32.mrf.mxu0
        %v537 = vadd.f32 %v517, %v536
        %538 = vdwg.mxu0
        %v539 = vtanh.pop %v537
        %v540 = vld [vmem:[#allocation10] sm:$0xff]
        %v541 = vld [vmem:[#allocation10 + $0x8] sm:$0xff]
        %v542 = vld [vmem:[#allocation10 + $0x10] sm:$0xff]
        %v543 = vld [vmem:[#allocation10 + $0x18] sm:$0xff]
        %v544 = vld [vmem:[#allocation10 + $0x20] sm:$0xff]
        %v545 = vld [vmem:[#allocation10 + $0x28] sm:$0xff]
        %v546 = vld [vmem:[#allocation10 + $0x30] sm:$0xff]
        %v547 = vld [vmem:[#allocation10 + $0x38] sm:$0xff]
        %v548 = vld [vmem:[#allocation10 + $0x40] sm:$0xff]
        %v549 = vld [vmem:[#allocation10 + $0x48] sm:$0xff]
        %v550 = vld [vmem:[#allocation10 + $0x50] sm:$0xff]
        %v551 = vld [vmem:[#allocation10 + $0x58] sm:$0xff]
        %v552 = vld [vmem:[#allocation10 + $0x60] sm:$0xff]
        %v553 = vld [vmem:[#allocation10 + $0x68] sm:$0xff]
        %v554 = vld [vmem:[#allocation10 + $0x70] sm:$0xff]
        %v555 = vld [vmem:[#allocation10 + $0x78] sm:$0xff]
        %v556 = vld [vmem:[%s8] sm:$0x1]
        %v558 = vperm.slane %v556, 0
        %560 = vmatpush.msra.mxu0 %v555
        %561 = vmatpush.msra.mxu0 %v554
        %562 = vmatpush.msra.mxu0 %v553
        %563 = vmatpush.msra.mxu0 %v552
        %564 = vmatpush.msra.mxu0 %v551
        %565 = vmatpush.msra.mxu0 %v550
        %566 = vmatpush.msra.mxu0 %v549
        %567 = vmatpush.msra.mxu0 %v548
        %568 = vmatpush.msra.mxu0 %v547
        %569 = vmatpush.msra.mxu0 %v546
        %570 = vmatpush.msra.mxu0 %v545
        %571 = vmatpush.msra.mxu0 %v544
        %572 = vmatpush.msra.mxu0 %v543
        %573 = vmatpush.msra.mxu0 %v542
        %574 = vmatpush.msra.mxu0 %v541
        %575 = vmatpush.msra.mxu0 %v540
        %576 = vmatmul.f32.gmra.mxu0 %v539
        %v577 = vpop.f32.mrf.mxu0
        %v578 = vadd.f32 %v558, %v577
        %579 = vdwg.mxu0
        %580 = vst [vmem:[%s415] sm:$0xff] %v578
        %s581 = sand.u32 %s230, 1
        %s582 = scalar_lea.sflag [#allocation4], %s581
        %s583 = sand.u32 %s230, 1
        %s584 = smul.addr %s583, 8
        %s585 = scalar_lea.vmem [#allocation11], %s584
        // Predicated region
        $region77: #{tpu_custom_call.1} parent=55 // pred_check
          %p586 = pneg %p240
        $region78: #{tpu_custom_call.1} parent=55 // pred_check_branch
          %588 = sbr.rel (%p586) target = $region80
        $region79: #{tpu_custom_call.1} parent=55 // pred_region
          %590 = vsyncadd %s582, 0
          %s591 = smul.addr %s28, 8
          %s592 = scalar_lea.hbm %s9, %s591
          %s594 = sshll.u32 %s585, 4
          %s595 = int_to_ptr.vmem [resolvable:$true] %s594
          %s596 = sshll.u32 %s592, 4
          %s597 = int_to_ptr.hbm [resolvable:$true] %s596
          %599 = dma.vmem_to_hbm [thread:$0]  %s595, 128, %s597, %s582
        $region80: #{tpu_custom_call.1} parent=55 // pred_fallthru
          _
      $region56: #{tpu_custom_call.1} parent=5 // pred_fallthru
        _
      %p600 = scmp.le.s32.totalorder 2, %s23
      // Predicated region
      $region81: #{tpu_custom_call.1} parent=5 // pred_check
        %p601 = pneg %p600
      $region82: #{tpu_custom_call.1} parent=5 // pred_check_branch
        %603 = sbr.rel (%p601) target = $region84
      $region83: #{tpu_custom_call.1} parent=5 // pred_region
        %s604 = ssub.s32 %s23, 2
        // Predicated region
        $region85: #{tpu_custom_call.1} parent=83 // pred_check
          %p605 = pneg %p246
        $region86: #{tpu_custom_call.1} parent=83 // pred_check_branch
          %607 = sbr.rel (%p605) target = $region88
        $region87: #{tpu_custom_call.1} parent=83 // pred_region
          %s608 = sand.u32 %s231, 1
          %s609 = scalar_lea.sflag [#allocation4], %s608
          %s610 = sand.u32 %s231, 1
          %s611 = smul.addr %s610, 8
          %s612 = scalar_lea.vmem [#allocation11], %s611
          %614 = dma.done %s609, 128
        $region88: #{tpu_custom_call.1} parent=83 // pred_fallthru
          _
      $region84: #{tpu_custom_call.1} parent=5 // pred_fallthru
        _
    $region6: #{tpu_custom_call.1} parent=1 // loop_footer
      %s27 = sadd.s32 1, %s23
    $region7: #{tpu_custom_call.1} parent=1 // loop_footer_branch
      %22 = sbr.rel target = $region3
    $region8: #{tpu_custom_call.1} parent=1 // loop_exit
      _
    %615 = vsyncpa [#allocation3], 1
    %s616 = scalar_lea.sflag [#allocation3], 1
    %617 = vsyncpa %s616, 1
    %618 = vsyncpa [#allocation6], 1
    %619 = vsyncpa [#allocation9], 1
    %620 = vsyncpa [#allocation4], 1
    %s621 = scalar_lea.sflag [#allocation4], 1
    %622 = vsyncpa %s621, 1

</llo_original>
